<compile_context>
chip_gen: v7x
topology: tpu7x:2x2x1
jax: 0.10.0
libtpu: 0.0.40
codegen_flags: <defaults>
</compile_context>

<pallas_src>
import functools

import jax
import jax.numpy as jnp
from jax.experimental import pallas as pl
from jax.experimental.pallas import tpu as pltpu


def _round_up(v, m):
    return -(-v // m) * m


def _nonlinear_res_kernel(x_ref, w1_ref, b1_ref, w2_ref, b2_ref, *rest,
                          apply_dropout: bool):
    if apply_dropout:
        mask_ref, o_ref, acc_ref = rest
    else:
        o_ref, acc_ref = rest

    k = pl.program_id(1)

    @pl.when(k == 0)
    def _():
        acc_ref[...] = jnp.zeros_like(acc_ref)

    x = x_ref[...]                                      # (tm, d_in), native dtype
    # fc1 (this hidden slice) + relu; MXU matmul with f32 accumulate.
    h = jnp.dot(x, w1_ref[...], preferred_element_type=jnp.float32)
    h = jnp.maximum(h + b1_ref[...].astype(jnp.float32), 0.0)
    # fc2 partial product for this hidden slice, accumulated in VMEM scratch.
    acc_ref[...] += jnp.dot(h.astype(w2_ref.dtype), w2_ref[...],
                            preferred_element_type=jnp.float32)

    @pl.when(k == pl.num_programs(1) - 1)
    def _():
        y = acc_ref[...] + b2_ref[...].astype(jnp.float32) + x.astype(jnp.float32)
        if apply_dropout:
            y = y * mask_ref[...]          # precomputed keep-mask * 1/(1-p)
        o_ref[...] = y.astype(o_ref.dtype)


def nonlinear_layer_with_res(x, w1, b1, w2, b2, *, dropout_p=0.0,
                             dropout_key=None, tm=256, tk=512):
    """x: (..., d_in); w1: (d_in, d_hidden); w2: (d_hidden, d_in)."""
    orig_shape = x.shape
    d_in = orig_shape[-1]
    d_hidden = w1.shape[1]

    x2d = x.reshape(-1, d_in)
    rows = x2d.shape[0]

    # Lane-dense last dims (multiple of 128); row tile a multiple of 8.
    d_in_p = _round_up(d_in, 128)
    tm_eff = min(tm, _round_up(rows, 8))
    rows_p = _round_up(rows, tm_eff)
    d_hidden_p = _round_up(d_hidden, 128)
    tk_eff = min(tk, d_hidden_p)
    d_hidden_p = _round_up(d_hidden_p, tk_eff)
    n_k = d_hidden_p // tk_eff

    # Zero-padding is mathematically inert for this layer:
    #   padded hidden cols: relu(0 + 0) = 0 -> contribute 0 through W2;
    #   padded output cols / rows are sliced off at the end.
    x_p = jnp.zeros((rows_p, d_in_p), x.dtype).at[:rows, :d_in].set(x2d)
    w1_p = jnp.zeros((d_in_p, d_hidden_p), w1.dtype).at[:d_in, :d_hidden].set(w1)
    b1_p = jnp.zeros((1, d_hidden_p), b1.dtype).at[0, :d_hidden].set(b1)
    w2_p = jnp.zeros((d_hidden_p, d_in_p), w2.dtype).at[:d_hidden, :d_in].set(w2)
    b2_p = jnp.zeros((1, d_in_p), b2.dtype).at[0, :d_in].set(b2)

    apply_dropout = dropout_p > 0.0
    inputs = [x_p, w1_p, b1_p, w2_p, b2_p]
    in_specs = [
        pl.BlockSpec((tm_eff, d_in_p), lambda i, k: (i, 0)),   # x (row-resident)
        pl.BlockSpec((d_in_p, tk_eff), lambda i, k: (0, k)),   # W1 hidden slice
        pl.BlockSpec((1, tk_eff), lambda i, k: (0, k)),        # b1 hidden slice
        pl.BlockSpec((tk_eff, d_in_p), lambda i, k: (k, 0)),   # W2 hidden slice
        pl.BlockSpec((1, d_in_p), lambda i, k: (0, 0)),        # b2
    ]
    if apply_dropout:
        if dropout_key is None:
            dropout_key = jax.random.PRNGKey(0)
        keep = jax.random.bernoulli(dropout_key, 1.0 - dropout_p,
                                    (rows_p, d_in_p))
        mask = keep.astype(jnp.float32) * jnp.float32(1.0 / (1.0 - dropout_p))
        inputs.append(mask)
        in_specs.append(pl.BlockSpec((tm_eff, d_in_p), lambda i, k: (i, 0)))

    itemsize = jnp.dtype(x.dtype).itemsize
    bytes_accessed = (
        x_p.size * itemsize
        + w1_p.size * w1_p.dtype.itemsize
        + w2_p.size * w2_p.dtype.itemsize
        + b1_p.size * b1_p.dtype.itemsize
        + b2_p.size * b2_p.dtype.itemsize
        + rows_p * d_in_p * itemsize
        + (rows_p * d_in_p * 4 if apply_dropout else 0))
    cost = pl.CostEstimate(
        flops=4 * rows_p * d_in_p * d_hidden_p,   # two matmuls
        transcendentals=0,
        bytes_accessed=bytes_accessed)

    kernel = functools.partial(_nonlinear_res_kernel,
                               apply_dropout=apply_dropout)

    out2d = pl.pallas_call(
        kernel,
        out_shape=jax.ShapeDtypeStruct((rows_p, d_in_p), x.dtype),
        grid=(rows_p // tm_eff, n_k),
        in_specs=in_specs,
        out_specs=pl.BlockSpec((tm_eff, d_in_p), lambda i, k: (i, 0)),
        scratch_shapes=[pltpu.VMEM((tm_eff, d_in_p), jnp.float32)],
        compiler_params=pltpu.CompilerParams(
            dimension_semantics=("parallel", "arbitrary")),
        cost_estimate=cost,
    )(*inputs)

    return out2d[:rows, :d_in].reshape(orig_shape)


if __name__ == "__main__":
    # Small shapes consistent with the module: x of shape (batch, seq, d_in).
    batch, seq, d_in, d_hidden = 2, 8, 32, 64
    dropout = 0.1

    key = jax.random.PRNGKey(0)
    kx, k1, k2, k3, k4, kd = jax.random.split(key, 6)

    x = jax.random.normal(kx, (batch, seq, d_in), dtype=jnp.float32)

    # nn.Linear-style U(-1/sqrt(fan_in), 1/sqrt(fan_in)) init.
    lim1 = 1.0 / (d_in ** 0.5)
    lim2 = 1.0 / (d_hidden ** 0.5)
    w1 = jax.random.uniform(k1, (d_in, d_hidden), jnp.float32, -lim1, lim1)
    b1 = jax.random.uniform(k2, (d_hidden,), jnp.float32, -lim1, lim1)
    w2 = jax.random.uniform(k3, (d_hidden, d_in), jnp.float32, -lim2, lim2)
    b2 = jax.random.uniform(k4, (d_in,), jnp.float32, -lim2, lim2)

    out = nonlinear_layer_with_res(x, w1, b1, w2, b2,
                                   dropout_p=dropout, dropout_key=kd)
    jax.block_until_ready(out)
    assert out.shape == x.shape

    # Sanity-check against a pure-JAX reference with dropout disabled.
    out_nodrop = nonlinear_layer_with_res(x, w1, b1, w2, b2, dropout_p=0.0)
    ref = jnp.maximum(x @ w1 + b1, 0.0) @ w2 + b2 + x
    assert jnp.allclose(out_nodrop, ref, atol=1e-5, rtol=1e-5)

    # Inverted-dropout semantics: each element is 0 or ref / (1 - p).
    scale = 1.0 / (1.0 - dropout)
    ok = (jnp.isclose(out, 0.0, atol=1e-6)
          | jnp.isclose(out, ref * scale, atol=1e-4, rtol=1e-4))
    assert bool(jnp.all(ok))

    print("KERNEL_OK")
</pallas_src>

<mosaic_0001>
module attributes {stable_mosaic.version = 11 : i64} {
  func.func @_nonlinear_res_kernel(%arg0: i32, %arg1: i32, %arg2: memref<16x128xf32, #tpu.memory_space<vmem>>, %arg3: memref<128x128xf32, #tpu.memory_space<vmem>>, %arg4: memref<1x128xf32, #tpu.memory_space<vmem>>, %arg5: memref<128x128xf32, #tpu.memory_space<vmem>>, %arg6: memref<1x128xf32, #tpu.memory_space<vmem>>, %arg7: memref<16x128xf32, #tpu.memory_space<vmem>>, %arg8: memref<16x128xf32, #tpu.memory_space<vmem>>, %arg9: memref<16x128xf32, #tpu.memory_space<vmem>>) attributes {dimension_semantics = [#tpu.dimension_semantics<parallel>, #tpu.dimension_semantics<arbitrary>], iteration_bounds = array<i64: 1, 1>, scalar_prefetch = 0 : i64, scratch_operands = 1 : i64, tpu.core_type = #tpu.core_type<tc>, window_params = [{transform_indices = @transform_0, window_bounds = array<i64: 16, 128>}, {transform_indices = @transform_1, window_bounds = array<i64: 128, 128>}, {transform_indices = @transform_2, window_bounds = array<i64: 1, 128>}, {transform_indices = @transform_3, window_bounds = array<i64: 128, 128>}, {pipeline_mode = #tpu.pipeline_mode<synchronous>, transform_indices = @transform_4, window_bounds = array<i64: 1, 128>}, {transform_indices = @transform_5, window_bounds = array<i64: 16, 128>}, {transform_indices = @transform_6, window_bounds = array<i64: 16, 128>}]} {
    %c0_i32 = arith.constant 0 : i32
    %0 = arith.cmpi eq, %arg1, %c0_i32 : i32
    %1 = arith.extui %0 : i1 to i32
    %c0_i32_0 = arith.constant 0 : i32
    %2 = arith.cmpi ne, %1, %c0_i32_0 : i32
    scf.if %2 {
      %cst_16 = arith.constant 0.000000e+00 : f32
      %19 = vector.broadcast %cst_16 : f32 to vector<16x128xf32>
      %c0_17 = arith.constant 0 : index
      %c0_18 = arith.constant 0 : index
      %20 = vector.load %arg9[%c0_17, %c0_18] : memref<16x128xf32, #tpu.memory_space<vmem>>, vector<16x128xf32>
      tpu.vector_store %arg9[%c0_17, %c0_18], %19 {strides = array<i32>} : memref<16x128xf32, #tpu.memory_space<vmem>>, vector<16x128xf32>,
    } else {
    }
    %c0 = arith.constant 0 : index
    %c0_1 = arith.constant 0 : index
    %3 = vector.load %arg2[%c0, %c0_1] : memref<16x128xf32, #tpu.memory_space<vmem>>, vector<16x128xf32>
    %c0_2 = arith.constant 0 : index
    %c0_3 = arith.constant 0 : index
    %4 = vector.load %arg3[%c0_2, %c0_3] : memref<128x128xf32, #tpu.memory_space<vmem>>, vector<128x128xf32>
    %cst = arith.constant dense<0.000000e+00> : vector<16x128xf32>
    %5 = tpu.matmul %3, %4, %cst {dimension_numbers = #tpu.dot_dimension_numbers<[1], [0], [0], [1], [0, 0, 1, 1], [], []>} : vector<16x128xf32>, vector<128x128xf32>, vector<16x128xf32> -> vector<16x128xf32>
    %c0_4 = arith.constant 0 : index
    %c0_5 = arith.constant 0 : index
    %6 = vector.load %arg4[%c0_4, %c0_5] : memref<1x128xf32, #tpu.memory_space<vmem>>, vector<1x128xf32>
    %7 = vector.broadcast %6 : vector<1x128xf32> to vector<16x128xf32>
    %8 = arith.addf %5, %7 : vector<16x128xf32>
    %cst_6 = arith.constant 0.000000e+00 : f32
    %9 = vector.broadcast %cst_6 : f32 to vector<16x128xf32>
    %10 = arith.maximumf %8, %9 : vector<16x128xf32>
    %c0_7 = arith.constant 0 : index
    %c0_8 = arith.constant 0 : index
    %11 = vector.load %arg9[%c0_7, %c0_8] : memref<16x128xf32, #tpu.memory_space<vmem>>, vector<16x128xf32>
    %c0_9 = arith.constant 0 : index
    %c0_10 = arith.constant 0 : index
    %12 = vector.load %arg5[%c0_9, %c0_10] : memref<128x128xf32, #tpu.memory_space<vmem>>, vector<128x128xf32>
    %cst_11 = arith.constant dense<0.000000e+00> : vector<16x128xf32>
    %13 = tpu.matmul %10, %12, %cst_11 {dimension_numbers = #tpu.dot_dimension_numbers<[1], [0], [0], [1], [0, 0, 1, 1], [], []>} : vector<16x128xf32>, vector<128x128xf32>, vector<16x128xf32> -> vector<16x128xf32>
    %14 = arith.addf %11, %13 : vector<16x128xf32>
    %c0_12 = arith.constant 0 : index
    %c0_13 = arith.constant 0 : index
    %15 = vector.load %arg9[%c0_12, %c0_13] : memref<16x128xf32, #tpu.memory_space<vmem>>, vector<16x128xf32>
    tpu.vector_store %arg9[%c0_12, %c0_13], %14 {strides = array<i32>} : memref<16x128xf32, #tpu.memory_space<vmem>>, vector<16x128xf32>,
    %c0_i32_14 = arith.constant 0 : i32
    %16 = arith.cmpi eq, %arg1, %c0_i32_14 : i32
    %17 = arith.extui %16 : i1 to i32
    %c0_i32_15 = arith.constant 0 : i32
    %18 = arith.cmpi ne, %17, %c0_i32_15 : i32
    scf.if %18 {
      %c0_16 = arith.constant 0 : index
      %c0_17 = arith.constant 0 : index
      %19 = vector.load %arg9[%c0_16, %c0_17] : memref<16x128xf32, #tpu.memory_space<vmem>>, vector<16x128xf32>
      %c0_18 = arith.constant 0 : index
      %c0_19 = arith.constant 0 : index
      %20 = vector.load %arg6[%c0_18, %c0_19] : memref<1x128xf32, #tpu.memory_space<vmem>>, vector<1x128xf32>
      %21 = vector.broadcast %20 : vector<1x128xf32> to vector<16x128xf32>
      %22 = arith.addf %19, %21 : vector<16x128xf32>
      %23 = arith.addf %22, %3 : vector<16x128xf32>
      %c0_20 = arith.constant 0 : index
      %c0_21 = arith.constant 0 : index
      %24 = vector.load %arg7[%c0_20, %c0_21] : memref<16x128xf32, #tpu.memory_space<vmem>>, vector<16x128xf32>
      %25 = arith.mulf %23, %24 : vector<16x128xf32>
      %c0_22 = arith.constant 0 : index
      %c0_23 = arith.constant 0 : index
      %26 = vector.load %arg8[%c0_22, %c0_23] : memref<16x128xf32, #tpu.memory_space<vmem>>, vector<16x128xf32>
      tpu.vector_store %arg8[%c0_22, %c0_23], %25 {strides = array<i32>} : memref<16x128xf32, #tpu.memory_space<vmem>>, vector<16x128xf32>,
    } else {
    }
    return
  }
  func.func @transform_0(%arg0: i32, %arg1: i32) -> (i32, i32) {
    %c0_i32 = arith.constant 0 : i32
    %c0_i32_0 = arith.constant 0 : i32
    return %arg0, %c0_i32 : i32, i32
  }
  func.func @transform_1(%arg0: i32, %arg1: i32) -> (i32, i32) {
    %c0_i32 = arith.constant 0 : i32
    %c0_i32_0 = arith.constant 0 : i32
    return %c0_i32, %arg1 : i32, i32
  }
  func.func @transform_2(%arg0: i32, %arg1: i32) -> (i32, i32) {
    %c0_i32 = arith.constant 0 : i32
    %c0_i32_0 = arith.constant 0 : i32
    return %c0_i32, %arg1 : i32, i32
  }
  func.func @transform_3(%arg0: i32, %arg1: i32) -> (i32, i32) {
    %c0_i32 = arith.constant 0 : i32
    %c0_i32_0 = arith.constant 0 : i32
    return %arg1, %c0_i32 : i32, i32
  }
  func.func @transform_4(%arg0: i32, %arg1: i32) -> (i32, i32) {
    %c0_i32 = arith.constant 0 : i32
    %c0_i32_0 = arith.constant 0 : i32
    %c0_i32_1 = arith.constant 0 : i32
    return %c0_i32, %c0_i32_0 : i32, i32
  }
  func.func @transform_5(%arg0: i32, %arg1: i32) -> (i32, i32) {
    %c0_i32 = arith.constant 0 : i32
    %c0_i32_0 = arith.constant 0 : i32
    return %arg0, %c0_i32 : i32, i32
  }
  func.func @transform_6(%arg0: i32, %arg1: i32) -> (i32, i32) {
    %c0_i32 = arith.constant 0 : i32
    %c0_i32_0 = arith.constant 0 : i32
    return %arg0, %c0_i32 : i32, i32
  }
}

</mosaic_0001>

<llo_original>
// kernel: tpu_custom_call.1
$region0: #{tpu_custom_call.1}
  #allocation0 [shape = 'u32[]', space=smem, size = 0x4, offset = 0x4, fixed_abs, tag = 'smem constant byte address 0x4 - core index']
  #allocation1 [shape = 'u32[144,128]{1,0:T(1,128)}', space=vmem, size = 0x12000, scoped, tag = 'internal scratch']
  #allocation2 [shape = 'f32[16,128]{1,0:T(8,128)}', space=vmem, size = 0x2000, scoped, tag = 'scratch operand']
  %s0 = inlined_call_operand.hbm [shape: f32[16,128], index: 0, kind: input, shape index: {}]
  %s1 = inlined_call_operand.hbm [shape: f32[128,128], index: 1, kind: input, shape index: {}]
  %s2 = inlined_call_operand.vmem [shape: f32[1,128], index: 2, kind: input, shape index: {}]
  %s3 = inlined_call_operand.hbm [shape: f32[128,128], index: 3, kind: input, shape index: {}]
  %s4 = inlined_call_operand.vmem [shape: f32[1,128], index: 4, kind: input, shape index: {}]
  %s5 = inlined_call_operand.vmem [shape: f32[16,128], index: 5, kind: input, shape index: {}]
  %s6 = inlined_call_operand.hbm [shape: f32[16,128], index: 6, kind: output, shape index: {}]
  %s7 = sld [smem:[#allocation0]]
  $region54: #{tpu_custom_call.1} parent=0
    _
  %s9 = ssub.s32 1, %s7
  %s10 = scalar_select 0, %s9, %s7
  $region1: #{tpu_custom_call.1} parent=0
    #allocation3 [shape = 'u8[8192]{0}', space=vmem, size = 0x2000, scoped, tag = 'input window, operand 0, single buffered']
    #allocation4 [shape = 's32[1]{0}', space=sflag, size = 0x4, scoped, tag = 'scoped memory for tpu_custom_call.1']
    #allocation5 [shape = 's32[1]{0}', space=sflag, size = 0x4, scoped, tag = 'scoped memory for tpu_custom_call.1']
    #allocation6 [shape = 'u8[65536]{0}', space=vmem, size = 0x10000, scoped, tag = 'input window, operand 1, single buffered']
    #allocation7 [shape = 's32[1]{0}', space=sflag, size = 0x4, scoped, tag = 'scoped memory for tpu_custom_call.1']
    #allocation8 [shape = 'u8[65536]{0}', space=vmem, size = 0x10000, scoped, tag = 'input window, operand 3, single buffered']
    #allocation9 [shape = 'u8[8192]{0}', space=vmem, size = 0x2000, scoped, tag = 'output window, operand 0, single buffered']
    %11 = vsyncpa [#allocation4], 0
    %12 = vsyncpa [#allocation7], 0
    %13 = vsyncpa [#allocation5], 0
    // Predicated region
    $region2: #{tpu_custom_call.1} parent=1 // pred_check
      _
    $region3: #{tpu_custom_call.1} parent=1 // pred_check_branch
      %15 = sbr.rel (0) target = $region5
    $region4: #{tpu_custom_call.1} parent=1 // pred_region
      %s17 = ssub.s32 256, 256
      %18 = vsyncadd [#allocation4], %s17
      %s19 = sshll.u32 [#allocation3], 4
      %s20 = int_to_ptr.vmem [resolvable:$true] %s19
      %25 = dma.hbm_to_vmem [thread:$0]  %s0, 256, %s20, [#allocation4], 128, 128, 8
    $region5: #{tpu_custom_call.1} parent=1 // pred_fallthru
      _
    // Predicated region
    $region6: #{tpu_custom_call.1} parent=1 // pred_check
      _
    $region7: #{tpu_custom_call.1} parent=1 // pred_check_branch
      %27 = sbr.rel (0) target = $region9
    $region8: #{tpu_custom_call.1} parent=1 // pred_region
      %s29 = ssub.s32 2048, 2048
      %30 = vsyncadd [#allocation7], %s29
      %s31 = sshll.u32 [#allocation6], 4
      %s32 = int_to_ptr.vmem [resolvable:$true] %s31
      %37 = dma.hbm_to_vmem [thread:$0]  %s1, 2048, %s32, [#allocation7], 128, 128, 8
    $region9: #{tpu_custom_call.1} parent=1 // pred_fallthru
      _
    // Predicated region
    $region10: #{tpu_custom_call.1} parent=1 // pred_check
      _
    $region11: #{tpu_custom_call.1} parent=1 // pred_check_branch
      %39 = sbr.rel (0) target = $region13
    $region12: #{tpu_custom_call.1} parent=1 // pred_region
      _
    $region13: #{tpu_custom_call.1} parent=1 // pred_fallthru
      _
    // Predicated region
    $region14: #{tpu_custom_call.1} parent=1 // pred_check
      _
    $region15: #{tpu_custom_call.1} parent=1 // pred_check_branch
      %41 = sbr.rel (0) target = $region17
    $region16: #{tpu_custom_call.1} parent=1 // pred_region
      %s43 = ssub.s32 2048, 2048
      %44 = vsyncadd [#allocation7], %s43
      %s45 = sshll.u32 [#allocation8], 4
      %s46 = int_to_ptr.vmem [resolvable:$true] %s45
      %51 = dma.hbm_to_vmem [thread:$0]  %s3, 2048, %s46, [#allocation7], 128, 128, 8
    $region17: #{tpu_custom_call.1} parent=1 // pred_fallthru
      _
    // Predicated region
    $region18: #{tpu_custom_call.1} parent=1 // pred_check
      _
    $region19: #{tpu_custom_call.1} parent=1 // pred_check_branch
      %53 = sbr.rel (0) target = $region21
    $region20: #{tpu_custom_call.1} parent=1 // pred_region
      _
    $region21: #{tpu_custom_call.1} parent=1 // pred_fallthru
      _
    // Predicated region
    $region22: #{tpu_custom_call.1} parent=1 // pred_check
      _
    $region23: #{tpu_custom_call.1} parent=1 // pred_check_branch
      %55 = sbr.rel (0) target = $region25
    $region24: #{tpu_custom_call.1} parent=1 // pred_region
      _
    $region25: #{tpu_custom_call.1} parent=1 // pred_fallthru
      _
    // Predicated region
    $region26: #{tpu_custom_call.1} parent=1 // pred_check
      _
    $region27: #{tpu_custom_call.1} parent=1 // pred_check_branch
      %57 = sbr.rel (0) target = $region29
    $region28: #{tpu_custom_call.1} parent=1 // pred_region
      %58 = dma.done [#allocation4], 256
    $region29: #{tpu_custom_call.1} parent=1 // pred_fallthru
      _
    // Predicated region
    $region30: #{tpu_custom_call.1} parent=1 // pred_check
      _
    $region31: #{tpu_custom_call.1} parent=1 // pred_check_branch
      %60 = sbr.rel (0) target = $region33
    $region32: #{tpu_custom_call.1} parent=1 // pred_region
      %61 = dma.done [#allocation7], 2048
    $region33: #{tpu_custom_call.1} parent=1 // pred_fallthru
      _
    // Predicated region
    $region34: #{tpu_custom_call.1} parent=1 // pred_check
      _
    $region35: #{tpu_custom_call.1} parent=1 // pred_check_branch
      %63 = sbr.rel (0) target = $region37
    $region36: #{tpu_custom_call.1} parent=1 // pred_region
      %64 = dma.done [#allocation7], 2048
    $region37: #{tpu_custom_call.1} parent=1 // pred_fallthru
      _
    %p65 = scmp.eq.s32.totalorder 0, 0
    // Predicated region
    $region38: #{tpu_custom_call.1} parent=1 // pred_check
      %p66 = pneg %p65
    $region39: #{tpu_custom_call.1} parent=1 // pred_check_branch
      %68 = sbr.rel (%p66) target = $region41
    $region40: #{tpu_custom_call.1} parent=1 // pred_region
      %69 = vst [vmem:[#allocation2] sm:$0xff] 0.0
      %70 = vst [vmem:[#allocation2 + $0x8] sm:$0xff] 0.0
    $region41: #{tpu_custom_call.1} parent=1 // pred_fallthru
      _
    %v71 = vld [vmem:[#allocation3] sm:$0xff]
    %v72 = vld [vmem:[#allocation3 + $0x8] sm:$0xff]
    %v73 = vld [vmem:[#allocation6] sm:$0xff]
    %v74 = vld [vmem:[#allocation6 + $0x8] sm:$0xff]
    %v75 = vld [vmem:[#allocation6 + $0x10] sm:$0xff]
    %v76 = vld [vmem:[#allocation6 + $0x18] sm:$0xff]
    %v77 = vld [vmem:[#allocation6 + $0x20] sm:$0xff]
    %v78 = vld [vmem:[#allocation6 + $0x28] sm:$0xff]
    %v79 = vld [vmem:[#allocation6 + $0x30] sm:$0xff]
    %v80 = vld [vmem:[#allocation6 + $0x38] sm:$0xff]
    %v81 = vld [vmem:[#allocation6 + $0x40] sm:$0xff]
    %v82 = vld [vmem:[#allocation6 + $0x48] sm:$0xff]
    %v83 = vld [vmem:[#allocation6 + $0x50] sm:$0xff]
    %v84 = vld [vmem:[#allocation6 + $0x58] sm:$0xff]
    %v85 = vld [vmem:[#allocation6 + $0x60] sm:$0xff]
    %v86 = vld [vmem:[#allocation6 + $0x68] sm:$0xff]
    %v87 = vld [vmem:[#allocation6 + $0x70] sm:$0xff]
    %v88 = vld [vmem:[#allocation6 + $0x78] sm:$0xff]
    %v89 = vld [vmem:[%s2] sm:$0x1]
    %v91 = vlaneseq
    %v92 = vshrl.u32 %v91, 7
    %v93 = vsub.s32 0, %v92
    %v94 = vrot.slane %v89, %v93
    %96 = vmatprep.subr.mxu0 0.0
    %97 = vmatpush1.msra.mxu0 %v73
    %98 = vmatprep.subr.mxu0 0.0
    %99 = vmatpush1.msra.mxu0 %v74
    %100 = vmatprep.subr.mxu0 0.0
    %101 = vmatpush1.msra.mxu0 %v75
    %102 = vmatprep.subr.mxu0 0.0
    %103 = vmatpush1.msra.mxu0 %v76
    %104 = vmatprep.subr.mxu0 0.0
    %105 = vmatpush1.msra.mxu0 %v77
    %106 = vmatprep.subr.mxu0 0.0
    %107 = vmatpush1.msra.mxu0 %v78
    %108 = vmatprep.subr.mxu0 0.0
    %109 = vmatpush1.msra.mxu0 %v79
    %110 = vmatprep.subr.mxu0 0.0
    %111 = vmatpush1.msra.mxu0 %v80
    %112 = vmatprep.subr.mxu0 0.0
    %113 = vmatpush1.msra.mxu0 %v81
    %114 = vmatprep.subr.mxu0 0.0
    %115 = vmatpush1.msra.mxu0 %v82
    %116 = vmatprep.subr.mxu0 0.0
    %117 = vmatpush1.msra.mxu0 %v83
    %118 = vmatprep.subr.mxu0 0.0
    %119 = vmatpush1.msra.mxu0 %v84
    %120 = vmatprep.subr.mxu0 0.0
    %121 = vmatpush1.msra.mxu0 %v85
    %122 = vmatprep.subr.mxu0 0.0
    %123 = vmatpush1.msra.mxu0 %v86
    %124 = vmatprep.subr.mxu0 0.0
    %125 = vmatpush1.msra.mxu0 %v87
    %126 = vmatprep.subr.mxu0 0.0
    %127 = vmatpush1.msra.mxu0 %v88
    %128 = vmatprep.subr.mxu0 0.0
    %129 = vmatpush1.msra.mxu0 0.0
    %130 = vmatprep.subr.mxu0 0.0
    %131 = vmatpush1.msra.mxu0 0.0
    %132 = vmatprep.subr.mxu0 0.0
    %133 = vmatpush1.msra.mxu0 0.0
    %134 = vmatprep.subr.mxu0 0.0
    %135 = vmatpush1.msra.mxu0 0.0
    %136 = vmatprep.subr.mxu0 0.0
    %137 = vmatpush1.msra.mxu0 0.0
    %138 = vmatprep.subr.mxu0 0.0
    %139 = vmatpush1.msra.mxu0 0.0
    %140 = vmatprep.subr.mxu0 0.0
    %141 = vmatpush1.msra.mxu0 0.0
    %142 = vmatprep.subr.mxu0 0.0
    %143 = vmatpush1.msra.mxu0 0.0
    %144 = vmatprep.subr.mxu0 0.0
    %145 = vmatpush1.msra.mxu0 0.0
    %146 = vmatprep.subr.mxu0 0.0
    %147 = vmatpush1.msra.mxu0 0.0
    %148 = vmatprep.subr.mxu0 0.0
    %149 = vmatpush1.msra.mxu0 0.0
    %150 = vmatprep.subr.mxu0 0.0
    %151 = vmatpush1.msra.mxu0 0.0
    %152 = vmatprep.subr.mxu0 0.0
    %153 = vmatpush1.msra.mxu0 0.0
    %154 = vmatprep.subr.mxu0 0.0
    %155 = vmatpush1.msra.mxu0 0.0
    %156 = vmatprep.subr.mxu0 0.0
    %157 = vmatpush1.msra.mxu0 0.0
    %158 = vmatprep.subr.mxu0 0.0
    %159 = vmatpush1.msra.mxu0 0.0
    %160 = vmatprep.mubr.f32.mxu0 0.0
    %161 = vmatmul.mubr.f32.gmra.mrb[0].mxu0 %v71
    %v162 = vpop.f32.mrb[0].mxu0
    %v163 = vadd.f32 %v94, %v162
    %v164 = vpop.f32.mrb[0].mxu0
    %165 = vmatprep.mubr.f32.mxu0 0.0
    %166 = vmatmul.mubr.f32.gmra.mrb[0].mxu0 %v72
    %v167 = vpop.f32.mrb[0].mxu0
    %v168 = vadd.f32 %v94, %v167
    %v169 = vpop.f32.mrb[0].mxu0
    %170 = vdwg.mxu0
    %v171 = vmax.f32 %v163, 0.0
    %v172 = vmax.f32 %v168, 0.0
    %v173 = vld [vmem:[#allocation2] sm:$0xff]
    %v174 = vld [vmem:[#allocation2 + $0x8] sm:$0xff]
    %v175 = vld [vmem:[#allocation8] sm:$0xff]
    %v176 = vld [vmem:[#allocation8 + $0x8] sm:$0xff]
    %v177 = vld [vmem:[#allocation8 + $0x10] sm:$0xff]
    %v178 = vld [vmem:[#allocation8 + $0x18] sm:$0xff]
    %v179 = vld [vmem:[#allocation8 + $0x20] sm:$0xff]
    %v180 = vld [vmem:[#allocation8 + $0x28] sm:$0xff]
    %v181 = vld [vmem:[#allocation8 + $0x30] sm:$0xff]
    %v182 = vld [vmem:[#allocation8 + $0x38] sm:$0xff]
    %v183 = vld [vmem:[#allocation8 + $0x40] sm:$0xff]
    %v184 = vld [vmem:[#allocation8 + $0x48] sm:$0xff]
    %v185 = vld [vmem:[#allocation8 + $0x50] sm:$0xff]
    %v186 = vld [vmem:[#allocation8 + $0x58] sm:$0xff]
    %v187 = vld [vmem:[#allocation8 + $0x60] sm:$0xff]
    %v188 = vld [vmem:[#allocation8 + $0x68] sm:$0xff]
    %v189 = vld [vmem:[#allocation8 + $0x70] sm:$0xff]
    %v190 = vld [vmem:[#allocation8 + $0x78] sm:$0xff]
    %191 = vmatprep.subr.mxu0 0.0
    %192 = vmatpush1.msra.mxu0 %v175
    %193 = vmatprep.subr.mxu0 0.0
    %194 = vmatpush1.msra.mxu0 %v176
    %195 = vmatprep.subr.mxu0 0.0
    %196 = vmatpush1.msra.mxu0 %v177
    %197 = vmatprep.subr.mxu0 0.0
    %198 = vmatpush1.msra.mxu0 %v178
    %199 = vmatprep.subr.mxu0 0.0
    %200 = vmatpush1.msra.mxu0 %v179
    %201 = vmatprep.subr.mxu0 0.0
    %202 = vmatpush1.msra.mxu0 %v180
    %203 = vmatprep.subr.mxu0 0.0
    %204 = vmatpush1.msra.mxu0 %v181
    %205 = vmatprep.subr.mxu0 0.0
    %206 = vmatpush1.msra.mxu0 %v182
    %207 = vmatprep.subr.mxu0 0.0
    %208 = vmatpush1.msra.mxu0 %v183
    %209 = vmatprep.subr.mxu0 0.0
    %210 = vmatpush1.msra.mxu0 %v184
    %211 = vmatprep.subr.mxu0 0.0
    %212 = vmatpush1.msra.mxu0 %v185
    %213 = vmatprep.subr.mxu0 0.0
    %214 = vmatpush1.msra.mxu0 %v186
    %215 = vmatprep.subr.mxu0 0.0
    %216 = vmatpush1.msra.mxu0 %v187
    %217 = vmatprep.subr.mxu0 0.0
    %218 = vmatpush1.msra.mxu0 %v188
    %219 = vmatprep.subr.mxu0 0.0
    %220 = vmatpush1.msra.mxu0 %v189
    %221 = vmatprep.subr.mxu0 0.0
    %222 = vmatpush1.msra.mxu0 %v190
    %223 = vmatprep.subr.mxu0 0.0
    %224 = vmatpush1.msra.mxu0 0.0
    %225 = vmatprep.subr.mxu0 0.0
    %226 = vmatpush1.msra.mxu0 0.0
    %227 = vmatprep.subr.mxu0 0.0
    %228 = vmatpush1.msra.mxu0 0.0
    %229 = vmatprep.subr.mxu0 0.0
    %230 = vmatpush1.msra.mxu0 0.0
    %231 = vmatprep.subr.mxu0 0.0
    %232 = vmatpush1.msra.mxu0 0.0
    %233 = vmatprep.subr.mxu0 0.0
    %234 = vmatpush1.msra.mxu0 0.0
    %235 = vmatprep.subr.mxu0 0.0
    %236 = vmatpush1.msra.mxu0 0.0
    %237 = vmatprep.subr.mxu0 0.0
    %238 = vmatpush1.msra.mxu0 0.0
    %239 = vmatprep.subr.mxu0 0.0
    %240 = vmatpush1.msra.mxu0 0.0
    %241 = vmatprep.subr.mxu0 0.0
    %242 = vmatpush1.msra.mxu0 0.0
    %243 = vmatprep.subr.mxu0 0.0
    %244 = vmatpush1.msra.mxu0 0.0
    %245 = vmatprep.subr.mxu0 0.0
    %246 = vmatpush1.msra.mxu0 0.0
    %247 = vmatprep.subr.mxu0 0.0
    %248 = vmatpush1.msra.mxu0 0.0
    %249 = vmatprep.subr.mxu0 0.0
    %250 = vmatpush1.msra.mxu0 0.0
    %251 = vmatprep.subr.mxu0 0.0
    %252 = vmatpush1.msra.mxu0 0.0
    %253 = vmatprep.subr.mxu0 0.0
    %254 = vmatpush1.msra.mxu0 0.0
    %255 = vmatprep.mubr.f32.mxu0 0.0
    %256 = vmatmul.mubr.f32.gmra.mrb[0].mxu0 %v171
    %v257 = vpop.f32.mrb[0].mxu0
    %v258 = vadd.f32 0.0, %v257
    %v259 = vpop.f32.mrb[0].mxu0
    %260 = vmatprep.mubr.f32.mxu0 0.0
    %261 = vmatmul.mubr.f32.gmra.mrb[0].mxu0 %v172
    %v262 = vpop.f32.mrb[0].mxu0
    %v263 = vadd.f32 0.0, %v262
    %v264 = vpop.f32.mrb[0].mxu0
    %265 = vdwg.mxu0
    %v266 = vadd.f32 %v173, %v258
    %v267 = vadd.f32 %v174, %v263
    %268 = vst [vmem:[#allocation2] sm:$0xff] %v266
    %269 = vst [vmem:[#allocation2 + $0x8] sm:$0xff] %v267
    // Predicated region
    $region42: #{tpu_custom_call.1} parent=1 // pred_check
      %p270 = pneg %p65
    $region43: #{tpu_custom_call.1} parent=1 // pred_check_branch
      %272 = sbr.rel (%p270) target = $region45
    $region44: #{tpu_custom_call.1} parent=1 // pred_region
      %v273 = vld [vmem:[#allocation2] sm:$0xff]
      %v274 = vld [vmem:[#allocation2 + $0x8] sm:$0xff]
      %v275 = vld [vmem:[%s4] sm:$0x1]
      %v277 = vlaneseq
      %v278 = vshrl.u32 %v277, 7
      %v279 = vsub.s32 0, %v278
      %v280 = vrot.slane %v275, %v279
      %v282 = vadd.f32 %v273, %v280
      %v283 = vadd.f32 %v274, %v280
      %v284 = vadd.f32 %v282, %v71
      %v285 = vadd.f32 %v283, %v72
      %v286 = vld [vmem:[%s5] sm:$0xff]
      %v287 = vld [vmem:[%s5 + $0x8] sm:$0xff]
      %v288 = vmul.f32 %v284, %v286
      %v289 = vmul.f32 %v285, %v287
      %290 = vst [vmem:[#allocation9] sm:$0xff] %v288
      %291 = vst [vmem:[#allocation9 + $0x8] sm:$0xff] %v289
    $region45: #{tpu_custom_call.1} parent=1 // pred_fallthru
      _
    // Predicated region
    $region46: #{tpu_custom_call.1} parent=1 // pred_check
      _
    $region47: #{tpu_custom_call.1} parent=1 // pred_check_branch
      %293 = sbr.rel (0) target = $region49
    $region48: #{tpu_custom_call.1} parent=1 // pred_region
      %s295 = ssub.s32 256, 256
      %296 = vsyncadd [#allocation5], %s295
      %s297 = sshll.u32 [#allocation9], 4
      %s298 = int_to_ptr.vmem [resolvable:$true] %s297
      %303 = dma.vmem_to_hbm [thread:$0]  %s298, 256, %s6, [#allocation5], 128, 128, 8
    $region49: #{tpu_custom_call.1} parent=1 // pred_fallthru
      _
    // Predicated region
    $region50: #{tpu_custom_call.1} parent=1 // pred_check
      _
    $region51: #{tpu_custom_call.1} parent=1 // pred_check_branch
      %305 = sbr.rel (0) target = $region53
    $region52: #{tpu_custom_call.1} parent=1 // pred_region
      %306 = dma.done [#allocation5], 256
    $region53: #{tpu_custom_call.1} parent=1 // pred_fallthru
      _
    %307 = vsyncpa [#allocation4], 1
    %308 = vsyncpa [#allocation7], 1
    %309 = vsyncpa [#allocation5], 1

</llo_original>
